<compile_context>
chip_gen: v5e
topology: v5e:2x2
jax: 0.10.0
libtpu: 0.0.40
codegen_flags: <defaults>
</compile_context>

<pallas_src>
import math

import jax
import jax.numpy as jnp
from jax.experimental import pallas as pl
from jax.experimental.pallas import tpu as pltpu


def _attn_pool_kernel(x_ref, m_ref, wq_ref, bq_ref, wkv_ref, bkv_ref,
                      wp_ref, bp_ref, selT_ref, out_ref):
    """Pooled-token-only attention for block_b samples per grid step.

      x_ref   : (B, t, C)  row-major frames (host-transposed from NCW)
      m_ref   : (B, 1, t)  float mask, 1.0 valid / 0.0 pad
      wq_ref  : (C, C)   = scale^2 * Wq (input-major),  bq_ref : (1, C)
      wkv_ref : (C, 2C)  = [Wk | Wv],                   bkv_ref: (1, 2C)
      wp_ref  : (C, C),                                  bp_ref : (1, C)
      selT_ref: (H, C)   selT[h, c] = 1.0 iff channel c belongs to head h
      out_ref : (B, 1, C)  attention-pooled token only (lane-dense store)
    """
    B, t, C = x_ref.shape

    x = x_ref[...]                                   # (B, t, C)
    m = m_ref[...]                                   # (B, 1, t)
    selT = selT_ref[...]                             # (H, C)
    wkv = wkv_ref[...]
    bkv = bkv_ref[...]

    # ---- MaskedAvgPool1D: masked mean over time -> one query token per b ----
    # (single tiny batched matmul; guard keeps fully-padded rows finite)
    n = jnp.maximum(jnp.sum(m, axis=-1, keepdims=True), 1.0)          # (B, 1, 1)
    xm = (jnp.einsum('bqt,btc->bqc', m, x,
                     preferred_element_type=jnp.float32) / n).reshape(B, C)

    # ---- batched token projections (one matmul each, M = B) ----
    q = jnp.dot(xm, wq_ref[...], preferred_element_type=jnp.float32) + bq_ref[...]   # (B, C)
    kvm = jnp.dot(xm, wkv, preferred_element_type=jnp.float32) + bkv                  # (B, 2C)
    km, vm = kvm[:, :C], kvm[:, C:]

    # ---- frame K/V: merge batch & time into the row dim -> one big matmul ----
    kvf = jnp.dot(x.reshape(B * t, C), wkv,
                  preferred_element_type=jnp.float32) + bkv            # (B*t, 2C)
    kv3 = kvf.reshape(B, t, 2 * C)
    k3, v3 = kv3[..., :C], kv3[..., C:]                                # (B, t, C)

    # ---- per-head scores: fold the head partition into H masked query rows ----
    qh = q[:, None, :] * selT[None, :, :]                              # (B, H, C)
    s = jnp.einsum('bhc,btc->bht', qh, k3,
                   preferred_element_type=jnp.float32)                 # (B, H, t)
    s_m = jnp.sum(qh * km[:, None, :], axis=-1, keepdims=True)         # (B, H, 1)

    # ---- mask + softmax over {mean token, t frames} ----
    s = jnp.where(m > 0.0, s, -1e30)
    s_m = jnp.where(m[:, :, :1] > 0.0, s_m, -1e30)   # mean key masked by mask[..., 0]
    mx = jnp.maximum(jnp.max(s, axis=-1, keepdims=True), s_m)          # (B, H, 1)
    p = jnp.exp(s - mx)
    p_m = jnp.exp(s_m - mx)
    inv = pl.reciprocal(jnp.sum(p, axis=-1, keepdims=True) + p_m, approx=True)
    a = p * inv                                                        # (B, H, t)
    a_m = p_m * inv                                                    # (B, H, 1)

    # ---- per-head context + mean-token value, then collapse heads (VPU/XLU) ----
    ctxh = jnp.einsum('bht,btc->bhc', a, v3,
                      preferred_element_type=jnp.float32)              # (B, H, C)
    ctxh = ctxh + a_m * vm[:, None, :]
    ctx = jnp.sum(ctxh * selT[None, :, :], axis=1)                     # (B, C)

    # ---- output projection of the pooled token only (lane-dense store) ----
    out = jnp.dot(ctx, wp_ref[...], preferred_element_type=jnp.float32) + bp_ref[...]
    out_ref[...] = out[:, None, :]


def _choose_block_b(bs, t, C, cap=8):
    """Largest divisor of bs (<= cap) with a modest working set; prefer grid >= 2."""
    bb = min(bs, cap)
    while bs % bb:
        bb -= 1
    # keep per-step x block + K/V/score intermediates roughly bounded
    while bb > 1 and 4 * bb * t * 6 * C > 12 * 2**20:
        nb = bb // 2
        while nb > 1 and bs % nb:
            nb -= 1
        if nb == bb:
            break
        bb = nb
    # v7x has two TensorCores: prefer at least two "parallel" grid steps
    if bs > 1 and bs // bb < 2:
        nb = bb // 2
        while nb >= 1 and bs % nb:
            nb -= 1
        if nb >= 1:
            bb = nb
    return max(bb, 1)


def attn_pool_1d(x_ncw, mask_bool, params, n_heads=4, block_b=None):
    """x_ncw: (bs, C, t) float32, mask_bool: (bs, 1, t) bool  (PyTorch layout)."""
    bs, C, t = x_ncw.shape
    assert C % n_heads == 0, "embd_dim must be divisible by n_heads"
    H = n_heads
    d = C // H
    scale2 = 1.0 / math.sqrt(d)                      # scale^2, scale = d**-0.25

    if block_b is None:
        block_b = _choose_block_b(bs, t, C)
    assert bs % block_b == 0
    grid = (bs // block_b,)

    # One host-side NCW -> row-major transpose of x (enables the merged
    # (block_b*t, C) matmul in the kernel); weights stay input-major (C_in, C_out).
    x_rows = jnp.transpose(x_ncw.astype(jnp.float32), (0, 2, 1))      # (bs, t, C)
    m = mask_bool.astype(jnp.float32)                                  # (bs, 1, t)

    wq_io = (params["wq"] * scale2).astype(jnp.float32)                # (C, C)
    bq_row = (params["bq"] * scale2).reshape(1, C).astype(jnp.float32)
    wkv_io = jnp.concatenate([params["wk"], params["wv"]], axis=1).astype(jnp.float32)   # (C, 2C)
    bkv_row = jnp.concatenate([params["bk"], params["bv"]]).reshape(1, 2 * C).astype(jnp.float32)
    wp_io = params["wp"].astype(jnp.float32)
    bp_row = params["bp"].reshape(1, C).astype(jnp.float32)
    selT = (jnp.arange(C)[None, :] // d == jnp.arange(H)[:, None]).astype(jnp.float32)   # (H, C)

    # VMEM budget: double-buffered x block + intermediates + resident weights.
    x_block_bytes = 4 * block_b * t * C
    weight_bytes = 4 * (2 * C * C + 2 * C * C + 5 * C + H * C)
    vmem_limit = int(min(100 * 2**20,
                         max(16 * 2**20,
                             8 * x_block_bytes + 2 * weight_bytes + (2 << 20))))

    pooled = pl.pallas_call(
        _attn_pool_kernel,
        out_shape=jax.ShapeDtypeStruct((bs, 1, C), jnp.float32),
        grid_spec=pltpu.PrefetchScalarGridSpec(
            num_scalar_prefetch=0,
            grid=grid,
            in_specs=[
                pl.BlockSpec((block_b, t, C), lambda i: (i, 0, 0)),    # x rows
                pl.BlockSpec((block_b, 1, t), lambda i: (i, 0, 0)),    # mask
                pl.BlockSpec((C, C), lambda i: (0, 0)),                # Wq (scale folded)
                pl.BlockSpec((1, C), lambda i: (0, 0)),                # bq
                pl.BlockSpec((C, 2 * C), lambda i: (0, 0)),            # fused Wk|Wv
                pl.BlockSpec((1, 2 * C), lambda i: (0, 0)),            # fused bk|bv
                pl.BlockSpec((C, C), lambda i: (0, 0)),                # Wp
                pl.BlockSpec((1, C), lambda i: (0, 0)),                # bp
                pl.BlockSpec((H, C), lambda i: (0, 0)),                # head selector
            ],
            out_specs=pl.BlockSpec((block_b, 1, C), lambda i: (i, 0, 0)),
        ),
        compiler_params=pltpu.CompilerParams(
            dimension_semantics=("parallel",),
            vmem_limit_bytes=vmem_limit),
    )(x_rows, m, wq_io, bq_row, wkv_io, bkv_row, wp_io, bp_row, selT)

    # x / mask passthrough handled by XLA: the kernel only emits the new token.
    pool_ncw = jnp.transpose(pooled, (0, 2, 1))                        # (bs, C, 1)
    x_out = jnp.concatenate([pool_ncw, x_ncw], axis=-1)                # (bs, C, t+1)
    mask_out = jnp.concatenate([mask_bool[..., :1], mask_bool], axis=-1)
    return x_out, mask_out


def attn_pool_1d_reference(x_ncw, mask_bool, params, n_heads=4):
    """Pure-JAX reference mirroring the PyTorch forward."""
    HI = jax.lax.Precision.HIGHEST
    bs, C, t = x_ncw.shape
    T = t + 1
    d = C // n_heads
    scale = 1.0 / math.sqrt(math.sqrt(d))

    mf = mask_bool.astype(jnp.float32)                          # (bs,1,t)
    x_sum = jnp.sum(x_ncw * mf, axis=-1, keepdims=True)
    n = jnp.sum(mf, axis=-1, keepdims=True)
    x_mean = x_sum / n                                          # (bs,C,1)
    h = jnp.concatenate([x_mean, x_ncw], axis=-1)               # (bs,C,T)
    mask2 = jnp.concatenate([mask_bool[..., :1], mask_bool], axis=-1)  # (bs,1,T)

    hT = jnp.transpose(h, (0, 2, 1))                            # (bs,T,C)
    q = jnp.einsum('btc,co->bto', hT, params['wq'], precision=HI) + params['bq']
    k = jnp.einsum('btc,co->bto', hT, params['wk'], precision=HI) + params['bk']
    v = jnp.einsum('btc,co->bto', hT, params['wv'], precision=HI) + params['bv']
    q = q.reshape(bs, T, n_heads, d)
    k = k.reshape(bs, T, n_heads, d)
    v = v.reshape(bs, T, n_heads, d)
    s = jnp.einsum('bqhd,bkhd->bhqk', q * scale, k * scale, precision=HI)
    s = jnp.where(mask2[:, :, None, :], s, -1e30)
    attn = jax.nn.softmax(s, axis=-1)
    o = jnp.einsum('bhqk,bkhd->bqhd', attn, v, precision=HI).reshape(bs, T, C)
    proj = jnp.einsum('btc,co->bto', o, params['wp'], precision=HI) + params['bp']
    pool = jnp.transpose(proj[:, :1, :], (0, 2, 1))             # (bs,C,1)
    x_out = jnp.concatenate([pool, x_ncw], axis=-1)             # (bs,C,T)
    return x_out, mask2


if __name__ == "__main__":
    bs, C, t, n_heads = 2, 32, 16, 4

    key = jax.random.PRNGKey(0)
    keys = jax.random.split(key, 9)

    x = jax.random.normal(keys[0], (bs, C, t), dtype=jnp.float32)
    lengths = jnp.array([t, 10])
    mask = (jnp.arange(t)[None, None, :] < lengths[:, None, None])   # (bs,1,t) bool

    def w(k):
        return 0.05 * jax.random.normal(k, (C, C), dtype=jnp.float32)

    def b(k):
        return 0.05 * jax.random.normal(k, (C,), dtype=jnp.float32)

    # Conv1d(C, C, 1) weights, stored as (C_in, C_out) so y = h @ W + b.
    params = {
        'wq': w(keys[1]), 'bq': b(keys[2]),
        'wk': w(keys[3]), 'bk': b(keys[4]),
        'wv': w(keys[5]), 'bv': b(keys[6]),
        'wp': w(keys[7]), 'bp': b(keys[8]),
    }

    x_out, mask_out = attn_pool_1d(x, mask, params, n_heads)
    x_out = jax.block_until_ready(x_out)
    mask_out = jax.block_until_ready(mask_out)

    x_ref, mask_ref = attn_pool_1d_reference(x, mask, params, n_heads)

    assert x_out.shape == (bs, C, t + 1), x_out.shape
    assert mask_out.shape == (bs, 1, t + 1), mask_out.shape
    assert jnp.allclose(x_out, x_ref, atol=1e-3, rtol=1e-3), (
        float(jnp.max(jnp.abs(x_out - x_ref))))
    assert bool(jnp.all(mask_out == mask_ref))

    print("KERNEL_OK")
</pallas_src>

<mosaic_0001>
module attributes {stable_mosaic.version = 11 : i64} {
  func.func @_attn_pool_kernel(%arg0: i32, %arg1: memref<1x16x32xf32, #tpu.memory_space<vmem>>, %arg2: memref<1x1x16xf32, #tpu.memory_space<vmem>>, %arg3: memref<32x32xf32, #tpu.memory_space<vmem>>, %arg4: memref<1x32xf32, #tpu.memory_space<vmem>>, %arg5: memref<32x64xf32, #tpu.memory_space<vmem>>, %arg6: memref<1x64xf32, #tpu.memory_space<vmem>>, %arg7: memref<32x32xf32, #tpu.memory_space<vmem>>, %arg8: memref<1x32xf32, #tpu.memory_space<vmem>>, %arg9: memref<4x32xf32, #tpu.memory_space<vmem>>, %arg10: memref<1x1x32xf32, #tpu.memory_space<vmem>>) attributes {dimension_semantics = [#tpu.dimension_semantics<parallel>], iteration_bounds = array<i64: 2>, scalar_prefetch = 0 : i64, scratch_operands = 0 : i64, tpu.core_type = #tpu.core_type<tc>, window_params = [{transform_indices = @transform_0, window_bounds = array<i64: 1, 16, 32>}, {transform_indices = @transform_1, window_bounds = array<i64: 1, 1, 16>}, {pipeline_mode = #tpu.pipeline_mode<synchronous>, transform_indices = @transform_2, window_bounds = array<i64: 32, 32>}, {pipeline_mode = #tpu.pipeline_mode<synchronous>, transform_indices = @transform_3, window_bounds = array<i64: 1, 32>}, {pipeline_mode = #tpu.pipeline_mode<synchronous>, transform_indices = @transform_4, window_bounds = array<i64: 32, 64>}, {pipeline_mode = #tpu.pipeline_mode<synchronous>, transform_indices = @transform_5, window_bounds = array<i64: 1, 64>}, {pipeline_mode = #tpu.pipeline_mode<synchronous>, transform_indices = @transform_6, window_bounds = array<i64: 32, 32>}, {pipeline_mode = #tpu.pipeline_mode<synchronous>, transform_indices = @transform_7, window_bounds = array<i64: 1, 32>}, {pipeline_mode = #tpu.pipeline_mode<synchronous>, transform_indices = @transform_8, window_bounds = array<i64: 4, 32>}, {transform_indices = @transform_9, window_bounds = array<i64: 1, 1, 32>}]} {
    %c0 = arith.constant 0 : index
    %c0_0 = arith.constant 0 : index
    %c0_1 = arith.constant 0 : index
    %0 = vector.load %arg1[%c0, %c0_0, %c0_1] : memref<1x16x32xf32, #tpu.memory_space<vmem>>, vector<1x16x32xf32>
    %c0_2 = arith.constant 0 : index
    %c0_3 = arith.constant 0 : index
    %c0_4 = arith.constant 0 : index
    %1 = vector.load %arg2[%c0_2, %c0_3, %c0_4] : memref<1x1x16xf32, #tpu.memory_space<vmem>>, vector<1x1x16xf32>
    %c0_5 = arith.constant 0 : index
    %c0_6 = arith.constant 0 : index
    %2 = vector.load %arg9[%c0_5, %c0_6] : memref<4x32xf32, #tpu.memory_space<vmem>>, vector<4x32xf32>
    %c0_7 = arith.constant 0 : index
    %c0_8 = arith.constant 0 : index
    %3 = vector.load %arg5[%c0_7, %c0_8] : memref<32x64xf32, #tpu.memory_space<vmem>>, vector<32x64xf32>
    %c0_9 = arith.constant 0 : index
    %c0_10 = arith.constant 0 : index
    %4 = vector.load %arg6[%c0_9, %c0_10] : memref<1x64xf32, #tpu.memory_space<vmem>>, vector<1x64xf32>
    %cst = arith.constant dense<0.000000e+00> : vector<1x1xf32>
    %5 = vector.multi_reduction <add>, %1, %cst [2] : vector<1x1x16xf32> to vector<1x1xf32>
    %6 = vector.shape_cast %5 : vector<1x1xf32> to vector<1x1x1xf32>
    %cst_11 = arith.constant 1.000000e+00 : f32
    %7 = vector.broadcast %cst_11 : f32 to vector<1x1x1xf32>
    %8 = arith.maximumf %6, %7 : vector<1x1x1xf32>
    "tpu.trace_start"() <{level = 10 : i32, message = "bqt,btc->bqc"}> : () -> ()
    %cst_12 = arith.constant dense<0.000000e+00> : vector<1x1x32xf32>
    %9 = tpu.matmul %1, %0, %cst_12 {dimension_numbers = #tpu.dot_dimension_numbers<[2], [1], [1], [2], [0, 0, 0, 1, 1, 2], [0], [0]>} : vector<1x1x16xf32>, vector<1x16x32xf32>, vector<1x1x32xf32> -> vector<1x1x32xf32>
    "tpu.trace_stop"() : () -> ()
    %10 = vector.broadcast %8 : vector<1x1x1xf32> to vector<1x1x32xf32>
    %11 = arith.divf %9, %10 : vector<1x1x32xf32>
    %12 = vector.shape_cast %11 : vector<1x1x32xf32> to vector<1x32xf32>
    %c0_13 = arith.constant 0 : index
    %c0_14 = arith.constant 0 : index
    %13 = vector.load %arg3[%c0_13, %c0_14] : memref<32x32xf32, #tpu.memory_space<vmem>>, vector<32x32xf32>
    %cst_15 = arith.constant dense<0.000000e+00> : vector<1x32xf32>
    %14 = tpu.matmul %12, %13, %cst_15 {dimension_numbers = #tpu.dot_dimension_numbers<[1], [0], [0], [1], [0, 0, 1, 1], [], []>} : vector<1x32xf32>, vector<32x32xf32>, vector<1x32xf32> -> vector<1x32xf32>
    %c0_16 = arith.constant 0 : index
    %c0_17 = arith.constant 0 : index
    %15 = vector.load %arg4[%c0_16, %c0_17] : memref<1x32xf32, #tpu.memory_space<vmem>>, vector<1x32xf32>
    %16 = arith.addf %14, %15 : vector<1x32xf32>
    %cst_18 = arith.constant dense<0.000000e+00> : vector<1x64xf32>
    %17 = tpu.matmul %12, %3, %cst_18 {dimension_numbers = #tpu.dot_dimension_numbers<[1], [0], [0], [1], [0, 0, 1, 1], [], []>} : vector<1x32xf32>, vector<32x64xf32>, vector<1x64xf32> -> vector<1x64xf32>
    %18 = arith.addf %17, %4 : vector<1x64xf32>
    %19 = vector.extract_strided_slice %18 {offsets = [0, 0], sizes = [1, 32], strides = [1, 1]} : vector<1x64xf32> to vector<1x32xf32>
    %20 = vector.extract_strided_slice %18 {offsets = [0, 32], sizes = [1, 32], strides = [1, 1]} : vector<1x64xf32> to vector<1x32xf32>
    %21 = vector.shape_cast %0 : vector<1x16x32xf32> to vector<16x32xf32>
    %cst_19 = arith.constant dense<0.000000e+00> : vector<16x64xf32>
    %22 = tpu.matmul %21, %3, %cst_19 {dimension_numbers = #tpu.dot_dimension_numbers<[1], [0], [0], [1], [0, 0, 1, 1], [], []>} : vector<16x32xf32>, vector<32x64xf32>, vector<16x64xf32> -> vector<16x64xf32>
    %23 = vector.broadcast %4 : vector<1x64xf32> to vector<16x64xf32>
    %24 = arith.addf %22, %23 : vector<16x64xf32>
    %25 = vector.shape_cast %24 : vector<16x64xf32> to vector<1x16x64xf32>
    %26 = vector.extract_strided_slice %25 {offsets = [0, 0, 0], sizes = [1, 16, 32], strides = [1, 1, 1]} : vector<1x16x64xf32> to vector<1x16x32xf32>
    %27 = vector.extract_strided_slice %25 {offsets = [0, 0, 32], sizes = [1, 16, 32], strides = [1, 1, 1]} : vector<1x16x64xf32> to vector<1x16x32xf32>
    %28 = vector.shape_cast %16 : vector<1x32xf32> to vector<1x1x32xf32>
    %29 = vector.shape_cast %2 : vector<4x32xf32> to vector<1x4x32xf32>
    %30 = vector.broadcast %28 : vector<1x1x32xf32> to vector<1x4x32xf32>
    %31 = arith.mulf %30, %29 : vector<1x4x32xf32>
    "tpu.trace_start"() <{level = 10 : i32, message = "bhc,btc->bht"}> : () -> ()
    %cst_20 = arith.constant dense<0.000000e+00> : vector<1x4x16xf32>
    %32 = tpu.matmul %31, %26, %cst_20 {dimension_numbers = #tpu.dot_dimension_numbers<[2], [2], [1], [1], [0, 0, 0, 1, 1, 1], [0], [0]>} : vector<1x4x32xf32>, vector<1x16x32xf32>, vector<1x4x16xf32> -> vector<1x4x16xf32>
    "tpu.trace_stop"() : () -> ()
    %33 = vector.shape_cast %19 : vector<1x32xf32> to vector<1x1x32xf32>
    %34 = vector.broadcast %33 : vector<1x1x32xf32> to vector<1x4x32xf32>
    %35 = arith.mulf %31, %34 : vector<1x4x32xf32>
    %cst_21 = arith.constant dense<0.000000e+00> : vector<1x4xf32>
    %36 = vector.multi_reduction <add>, %35, %cst_21 [2] : vector<1x4x32xf32> to vector<1x4xf32>
    %37 = vector.shape_cast %36 : vector<1x4xf32> to vector<1x4x1xf32>
    %cst_22 = arith.constant 0.000000e+00 : f32
    %38 = vector.broadcast %cst_22 : f32 to vector<1x1x16xf32>
    %39 = arith.cmpf ogt, %1, %38 : vector<1x1x16xf32>
    %cst_23 = arith.constant -1.000000e+30 : f32
    %40 = vector.shape_cast %39 : vector<1x1x16xi1> to vector<1x1x16xi1>
    %41 = vector.broadcast %40 : vector<1x1x16xi1> to vector<1x4x16xi1>
    %42 = vector.broadcast %cst_23 : f32 to vector<1x4x16xf32>
    %43 = arith.select %41, %32, %42 : vector<1x4x16xi1>, vector<1x4x16xf32>
    %44 = vector.extract_strided_slice %1 {offsets = [0, 0, 0], sizes = [1, 1, 1], strides = [1, 1, 1]} : vector<1x1x16xf32> to vector<1x1x1xf32>
    %cst_24 = arith.constant 0.000000e+00 : f32
    %45 = vector.broadcast %cst_24 : f32 to vector<1x1x1xf32>
    %46 = arith.cmpf ogt, %44, %45 : vector<1x1x1xf32>
    %cst_25 = arith.constant -1.000000e+30 : f32
    %47 = vector.shape_cast %46 : vector<1x1x1xi1> to vector<1x1x1xi1>
    %48 = vector.broadcast %47 : vector<1x1x1xi1> to vector<1x4x1xi1>
    %49 = vector.broadcast %cst_25 : f32 to vector<1x4x1xf32>
    %50 = arith.select %48, %37, %49 : vector<1x4x1xi1>, vector<1x4x1xf32>
    %cst_26 = arith.constant dense<0xFF800000> : vector<1x4xf32>
    %51 = vector.multi_reduction <maximumf>, %43, %cst_26 [2] : vector<1x4x16xf32> to vector<1x4xf32>
    %52 = vector.shape_cast %51 : vector<1x4xf32> to vector<1x4x1xf32>
    %53 = arith.maximumf %52, %50 : vector<1x4x1xf32>
    %54 = vector.broadcast %53 : vector<1x4x1xf32> to vector<1x4x16xf32>
    %55 = arith.subf %43, %54 : vector<1x4x16xf32>
    %56 = math.exp %55 : vector<1x4x16xf32>
    %57 = arith.subf %50, %53 : vector<1x4x1xf32>
    %58 = math.exp %57 : vector<1x4x1xf32>
    %cst_27 = arith.constant dense<0.000000e+00> : vector<1x4xf32>
    %59 = vector.multi_reduction <add>, %56, %cst_27 [2] : vector<1x4x16xf32> to vector<1x4xf32>
    %60 = vector.shape_cast %59 : vector<1x4xf32> to vector<1x4x1xf32>
    %61 = arith.addf %60, %58 : vector<1x4x1xf32>
    %62 = tpu.reciprocal %61 {approx = true} : vector<1x4x1xf32> -> vector<1x4x1xf32>
    %63 = vector.broadcast %62 : vector<1x4x1xf32> to vector<1x4x16xf32>
    %64 = arith.mulf %56, %63 : vector<1x4x16xf32>
    %65 = arith.mulf %58, %62 : vector<1x4x1xf32>
    "tpu.trace_start"() <{level = 10 : i32, message = "bht,btc->bhc"}> : () -> ()
    %cst_28 = arith.constant dense<0.000000e+00> : vector<1x4x32xf32>
    %66 = tpu.matmul %64, %27, %cst_28 {dimension_numbers = #tpu.dot_dimension_numbers<[2], [1], [1], [2], [0, 0, 0, 1, 1, 2], [0], [0]>} : vector<1x4x16xf32>, vector<1x16x32xf32>, vector<1x4x32xf32> -> vector<1x4x32xf32>
    "tpu.trace_stop"() : () -> ()
    %67 = vector.shape_cast %20 : vector<1x32xf32> to vector<1x1x32xf32>
    %68 = vector.broadcast %65 : vector<1x4x1xf32> to vector<1x4x32xf32>
    %69 = vector.broadcast %67 : vector<1x1x32xf32> to vector<1x4x32xf32>
    %70 = arith.mulf %68, %69 : vector<1x4x32xf32>
    %71 = arith.addf %66, %70 : vector<1x4x32xf32>
    %72 = vector.shape_cast %2 : vector<4x32xf32> to vector<1x4x32xf32>
    %73 = arith.mulf %71, %72 : vector<1x4x32xf32>
    %cst_29 = arith.constant dense<0.000000e+00> : vector<1x32xf32>
    %74 = vector.multi_reduction <add>, %73, %cst_29 [1] : vector<1x4x32xf32> to vector<1x32xf32>
    %c0_30 = arith.constant 0 : index
    %c0_31 = arith.constant 0 : index
    %75 = vector.load %arg7[%c0_30, %c0_31] : memref<32x32xf32, #tpu.memory_space<vmem>>, vector<32x32xf32>
    %cst_32 = arith.constant dense<0.000000e+00> : vector<1x32xf32>
    %76 = tpu.matmul %74, %75, %cst_32 {dimension_numbers = #tpu.dot_dimension_numbers<[1], [0], [0], [1], [0, 0, 1, 1], [], []>} : vector<1x32xf32>, vector<32x32xf32>, vector<1x32xf32> -> vector<1x32xf32>
    %c0_33 = arith.constant 0 : index
    %c0_34 = arith.constant 0 : index
    %77 = vector.load %arg8[%c0_33, %c0_34] : memref<1x32xf32, #tpu.memory_space<vmem>>, vector<1x32xf32>
    %78 = arith.addf %76, %77 : vector<1x32xf32>
    %79 = vector.shape_cast %78 : vector<1x32xf32> to vector<1x1x32xf32>
    %c0_35 = arith.constant 0 : index
    %c0_36 = arith.constant 0 : index
    %c0_37 = arith.constant 0 : index
    %80 = vector.load %arg10[%c0_35, %c0_36, %c0_37] : memref<1x1x32xf32, #tpu.memory_space<vmem>>, vector<1x1x32xf32>
    tpu.vector_store %arg10[%c0_35, %c0_36, %c0_37], %79 {strides = array<i32>} : memref<1x1x32xf32, #tpu.memory_space<vmem>>, vector<1x1x32xf32>,
    return
  }
  func.func @transform_0(%arg0: i32) -> (i32, i32, i32) {
    %c0_i32 = arith.constant 0 : i32
    %c0_i32_0 = arith.constant 0 : i32
    %c0_i32_1 = arith.constant 0 : i32
    return %arg0, %c0_i32, %c0_i32_0 : i32, i32, i32
  }
  func.func @transform_1(%arg0: i32) -> (i32, i32, i32) {
    %c0_i32 = arith.constant 0 : i32
    %c0_i32_0 = arith.constant 0 : i32
    %c0_i32_1 = arith.constant 0 : i32
    return %arg0, %c0_i32, %c0_i32_0 : i32, i32, i32
  }
  func.func @transform_2(%arg0: i32) -> (i32, i32) {
    %c0_i32 = arith.constant 0 : i32
    %c0_i32_0 = arith.constant 0 : i32
    %c0_i32_1 = arith.constant 0 : i32
    return %c0_i32, %c0_i32_0 : i32, i32
  }
  func.func @transform_3(%arg0: i32) -> (i32, i32) {
    %c0_i32 = arith.constant 0 : i32
    %c0_i32_0 = arith.constant 0 : i32
    %c0_i32_1 = arith.constant 0 : i32
    return %c0_i32, %c0_i32_0 : i32, i32
  }
  func.func @transform_4(%arg0: i32) -> (i32, i32) {
    %c0_i32 = arith.constant 0 : i32
    %c0_i32_0 = arith.constant 0 : i32
    %c0_i32_1 = arith.constant 0 : i32
    return %c0_i32, %c0_i32_0 : i32, i32
  }
  func.func @transform_5(%arg0: i32) -> (i32, i32) {
    %c0_i32 = arith.constant 0 : i32
    %c0_i32_0 = arith.constant 0 : i32
    %c0_i32_1 = arith.constant 0 : i32
    return %c0_i32, %c0_i32_0 : i32, i32
  }
  func.func @transform_6(%arg0: i32) -> (i32, i32) {
    %c0_i32 = arith.constant 0 : i32
    %c0_i32_0 = arith.constant 0 : i32
    %c0_i32_1 = arith.constant 0 : i32
    return %c0_i32, %c0_i32_0 : i32, i32
  }
  func.func @transform_7(%arg0: i32) -> (i32, i32) {
    %c0_i32 = arith.constant 0 : i32
    %c0_i32_0 = arith.constant 0 : i32
    %c0_i32_1 = arith.constant 0 : i32
    return %c0_i32, %c0_i32_0 : i32, i32
  }
  func.func @transform_8(%arg0: i32) -> (i32, i32) {
    %c0_i32 = arith.constant 0 : i32
    %c0_i32_0 = arith.constant 0 : i32
    %c0_i32_1 = arith.constant 0 : i32
    return %c0_i32, %c0_i32_0 : i32, i32
  }
  func.func @transform_9(%arg0: i32) -> (i32, i32, i32) {
    %c0_i32 = arith.constant 0 : i32
    %c0_i32_0 = arith.constant 0 : i32
    %c0_i32_1 = arith.constant 0 : i32
    return %arg0, %c0_i32, %c0_i32_0 : i32, i32, i32
  }
}

</mosaic_0001>

<llo_original>
// kernel: tpu_custom_call.1
$region0: #{tpu_custom_call.1}
  #allocation0 [shape = 'u32[]', space=smem, size = 0x4, offset = 0x4, fixed_abs, tag = 'smem constant byte address 0x4 - core index']
  #allocation1 [shape = 'u32[72,128]{1,0:T(1,128)}', space=vmem, size = 0x9000, scoped, tag = 'internal scratch']
  %s0 = inlined_call_operand.hbm [shape: f32[2,16,32], index: 0, kind: input, shape index: {}]
  %s1 = inlined_call_operand.hbm [shape: f32[2,1,16], index: 1, kind: input, shape index: {}]
  %s2 = inlined_call_operand.hbm [shape: f32[32,32], index: 2, kind: input, shape index: {}]
  %s3 = inlined_call_operand.vmem [shape: f32[1,32], index: 3, kind: input, shape index: {}]
  %s4 = inlined_call_operand.hbm [shape: f32[32,64], index: 4, kind: input, shape index: {}]
  %s5 = inlined_call_operand.vmem [shape: f32[1,64], index: 5, kind: input, shape index: {}]
  %s6 = inlined_call_operand.hbm [shape: f32[32,32], index: 6, kind: input, shape index: {}]
  %s7 = inlined_call_operand.vmem [shape: f32[1,32], index: 7, kind: input, shape index: {}]
  %s8 = inlined_call_operand.vmem [shape: f32[4,32], index: 8, kind: input, shape index: {}]
  %s9 = inlined_call_operand.hbm [shape: f32[2,1,32], index: 9, kind: output, shape index: {}]
  %s10 = sld [smem:[#allocation0]]
  $region89: #{tpu_custom_call.1} parent=0
    _
  %s12 = ssub.s32 1, %s10
  %s13 = scalar_select 0, %s12, %s10
  $region1: #{tpu_custom_call.1} parent=0
    #allocation2 [shape = 'u8[16384]{0}', space=vmem, size = 0x4000, scoped, tag = 'input window, operand 0']
    #allocation3 [shape = 's32[2]{0}', space=sflag, size = 0x8, scoped, tag = 'scoped memory for tpu_custom_call.1']
    #allocation4 [shape = 's32[2]{0}', space=sflag, size = 0x8, scoped, tag = 'scoped memory for tpu_custom_call.1']
    #allocation5 [shape = 'u8[1024]{0}', space=vmem, size = 0x400, scoped, tag = 'input window, operand 1']
    #allocation6 [shape = 's32[2]{0}', space=sflag, size = 0x8, scoped, tag = 'scoped memory for tpu_custom_call.1']
    #allocation7 [shape = 'u8[16384]{0}', space=vmem, size = 0x4000, scoped, tag = 'input window, operand 2, single buffered']
    #allocation8 [shape = 'u8[16384]{0}', space=vmem, size = 0x4000, scoped, tag = 'input window, operand 4, single buffered']
    #allocation9 [shape = 's32[1]{0}', space=sflag, size = 0x4, scoped, tag = 'scoped memory for tpu_custom_call.1']
    #allocation10 [shape = 'u8[16384]{0}', space=vmem, size = 0x4000, scoped, tag = 'input window, operand 6, single buffered']
    #allocation11 [shape = 'u8[1024]{0}', space=vmem, size = 0x400, scoped, tag = 'output window, operand 0']
    %14 = vsyncpa [#allocation3], 0
    %s15 = scalar_lea.sflag [#allocation3], 1
    %16 = vsyncpa %s15, 0
    %17 = vsyncpa [#allocation6], 0
    %s18 = scalar_lea.sflag [#allocation6], 1
    %19 = vsyncpa %s18, 0
    %20 = vsyncpa [#allocation9], 0
    %21 = vsyncpa [#allocation4], 0
    %s22 = scalar_lea.sflag [#allocation4], 1
    %23 = vsyncpa %s22, 0
    loop: start=0, step=1, limit=4
    $region2: #{tpu_custom_call.1} parent=1 // loop_pre_header
      _
    $region3: #{tpu_custom_call.1} parent=1 // loop_header
      %s25 = sphi 0, %s29
      %p26 = scmp.ge.s32.totalorder %s25, 4
      %s35 = sphi 0, %s37
      %s38 = sphi 0, %s35
      %s39 = sphi 0, %s38
      %s55 = sphi 0, %s39
      %s61 = sphi 0, %s63
      %s64 = sphi 0, %s61
      %s65 = sphi 0, %s64
      %s81 = sphi 0, %s65
      %s85 = sphi 0, %s85
      %s87 = sphi 0, %s85
      %s88 = sphi 0, %s87
      %s102 = sphi 0, %s88
      %s106 = sphi 0, %s106
      %s108 = sphi 0, %s106
      %s109 = sphi 0, %s108
      %s123 = sphi 0, %s109
      %s127 = sphi 0, %s127
      %s129 = sphi 0, %s127
      %s130 = sphi 0, %s129
      %s144 = sphi 0, %s130
      %s148 = sphi 0, %s148
      %s150 = sphi 0, %s148
      %s151 = sphi 0, %s150
      %s165 = sphi 0, %s151
      %s169 = sphi 0, %s169
      %s171 = sphi 0, %s169
      %s172 = sphi 0, %s171
      %s186 = sphi 0, %s172
      %s190 = sphi 0, %s190
      %s192 = sphi 0, %s190
      %s193 = sphi 0, %s192
      %s207 = sphi 0, %s193
      %s211 = sphi 0, %s211
      %s213 = sphi 0, %s211
      %s214 = sphi 0, %s213
      %s228 = sphi 0, %s214
      %s234 = sphi 0, %s236
      %s237 = sphi 0, %s234
      %s238 = sphi 0, %s237
      %s254 = sphi 0, %s238
    $region4: #{tpu_custom_call.1} parent=1 // loop_header_branch
      %28 = sbr.rel (%p26) target = $region8
    $region5: #{tpu_custom_call.1} parent=1 // loop_body
      %s30 = ssub.s32 %s25, 1
      %s31 = ssub.s32 %s25, 2
      %s32 = sadd.s32 %s25, 1
      %s33 = ssub.s32 %s25, %s32
      %p34 = scmp.eq.s32.totalorder %s33, 0
      %s36 = sadd.s32 %s35, 1
      %s37 = scalar_select %p34, %s35, %s36
      %p40 = pneg %p34
      %p41 = scmp.eq.s32.totalorder %s25, 1
      %p42 = por %p40, %p41
      %p43 = scmp.ne.s32.totalorder %s35, %s38
      %p44 = scmp.eq.s32.totalorder %s25, 0
      %p45 = por %p43, %p44
      %p46 = scmp.ne.s32.totalorder %s35, %s38
      %p47 = scmp.eq.s32.totalorder %s30, 1
      %p48 = por %p46, %p47
      %p49 = scmp.ne.s32.totalorder %s38, %s39
      %p50 = scmp.eq.s32.totalorder %s30, 0
      %p51 = por %p49, %p50
      %p52 = scmp.ne.s32.totalorder %s38, %s39
      %p53 = scmp.eq.s32.totalorder %s31, 1
      %p54 = por %p52, %p53
      %p56 = scmp.ne.s32.totalorder %s39, %s55
      %p57 = scmp.eq.s32.totalorder %s31, 0
      %p58 = por %p56, %p57
      %s59 = ssub.s32 %s25, %s32
      %p60 = scmp.eq.s32.totalorder %s59, 0
      %s62 = sadd.s32 %s61, 1
      %s63 = scalar_select %p60, %s61, %s62
      %p66 = pneg %p60
      %p67 = scmp.eq.s32.totalorder %s25, 1
      %p68 = por %p66, %p67
      %p69 = scmp.ne.s32.totalorder %s61, %s64
      %p70 = scmp.eq.s32.totalorder %s25, 0
      %p71 = por %p69, %p70
      %p72 = scmp.ne.s32.totalorder %s61, %s64
      %p73 = scmp.eq.s32.totalorder %s30, 1
      %p74 = por %p72, %p73
      %p75 = scmp.ne.s32.totalorder %s64, %s65
      %p76 = scmp.eq.s32.totalorder %s30, 0
      %p77 = por %p75, %p76
      %p78 = scmp.ne.s32.totalorder %s64, %s65
      %p79 = scmp.eq.s32.totalorder %s31, 1
      %p80 = por %p78, %p79
      %p82 = scmp.ne.s32.totalorder %s65, %s81
      %p83 = scmp.eq.s32.totalorder %s31, 0
      %p84 = por %p82, %p83
      %s86 = sadd.s32 %s85, 1
      %p89 = scmp.eq.s32.totalorder %s25, 1
      %p90 = scmp.ne.s32.totalorder %s85, %s87
      %p91 = scmp.eq.s32.totalorder %s25, 0
      %p92 = por %p90, %p91
      %p93 = scmp.ne.s32.totalorder %s85, %s87
      %p94 = scmp.eq.s32.totalorder %s30, 1
      %p95 = por %p93, %p94
      %p96 = scmp.ne.s32.totalorder %s87, %s88
      %p97 = scmp.eq.s32.totalorder %s30, 0
      %p98 = por %p96, %p97
      %p99 = scmp.ne.s32.totalorder %s87, %s88
      %p100 = scmp.eq.s32.totalorder %s31, 1
      %p101 = por %p99, %p100
      %p103 = scmp.ne.s32.totalorder %s88, %s102
      %p104 = scmp.eq.s32.totalorder %s31, 0
      %p105 = por %p103, %p104
      %s107 = sadd.s32 %s106, 1
      %p110 = scmp.eq.s32.totalorder %s25, 1
      %p111 = scmp.ne.s32.totalorder %s106, %s108
      %p112 = scmp.eq.s32.totalorder %s25, 0
      %p113 = por %p111, %p112
      %p114 = scmp.ne.s32.totalorder %s106, %s108
      %p115 = scmp.eq.s32.totalorder %s30, 1
      %p116 = por %p114, %p115
      %p117 = scmp.ne.s32.totalorder %s108, %s109
      %p118 = scmp.eq.s32.totalorder %s30, 0
      %p119 = por %p117, %p118
      %p120 = scmp.ne.s32.totalorder %s108, %s109
      %p121 = scmp.eq.s32.totalorder %s31, 1
      %p122 = por %p120, %p121
      %p124 = scmp.ne.s32.totalorder %s109, %s123
      %p125 = scmp.eq.s32.totalorder %s31, 0
      %p126 = por %p124, %p125
      %s128 = sadd.s32 %s127, 1
      %p131 = scmp.eq.s32.totalorder %s25, 1
      %p132 = scmp.ne.s32.totalorder %s127, %s129
      %p133 = scmp.eq.s32.totalorder %s25, 0
      %p134 = por %p132, %p133
      %p135 = scmp.ne.s32.totalorder %s127, %s129
      %p136 = scmp.eq.s32.totalorder %s30, 1
      %p137 = por %p135, %p136
      %p138 = scmp.ne.s32.totalorder %s129, %s130
      %p139 = scmp.eq.s32.totalorder %s30, 0
      %p140 = por %p138, %p139
      %p141 = scmp.ne.s32.totalorder %s129, %s130
      %p142 = scmp.eq.s32.totalorder %s31, 1
      %p143 = por %p141, %p142
      %p145 = scmp.ne.s32.totalorder %s130, %s144
      %p146 = scmp.eq.s32.totalorder %s31, 0
      %p147 = por %p145, %p146
      %s149 = sadd.s32 %s148, 1
      %p152 = scmp.eq.s32.totalorder %s25, 1
      %p153 = scmp.ne.s32.totalorder %s148, %s150
      %p154 = scmp.eq.s32.totalorder %s25, 0
      %p155 = por %p153, %p154
      %p156 = scmp.ne.s32.totalorder %s148, %s150
      %p157 = scmp.eq.s32.totalorder %s30, 1
      %p158 = por %p156, %p157
      %p159 = scmp.ne.s32.totalorder %s150, %s151
      %p160 = scmp.eq.s32.totalorder %s30, 0
      %p161 = por %p159, %p160
      %p162 = scmp.ne.s32.totalorder %s150, %s151
      %p163 = scmp.eq.s32.totalorder %s31, 1
      %p164 = por %p162, %p163
      %p166 = scmp.ne.s32.totalorder %s151, %s165
      %p167 = scmp.eq.s32.totalorder %s31, 0
      %p168 = por %p166, %p167
      %s170 = sadd.s32 %s169, 1
      %p173 = scmp.eq.s32.totalorder %s25, 1
      %p174 = scmp.ne.s32.totalorder %s169, %s171
      %p175 = scmp.eq.s32.totalorder %s25, 0
      %p176 = por %p174, %p175
      %p177 = scmp.ne.s32.totalorder %s169, %s171
      %p178 = scmp.eq.s32.totalorder %s30, 1
      %p179 = por %p177, %p178
      %p180 = scmp.ne.s32.totalorder %s171, %s172
      %p181 = scmp.eq.s32.totalorder %s30, 0
      %p182 = por %p180, %p181
      %p183 = scmp.ne.s32.totalorder %s171, %s172
      %p184 = scmp.eq.s32.totalorder %s31, 1
      %p185 = por %p183, %p184
      %p187 = scmp.ne.s32.totalorder %s172, %s186
      %p188 = scmp.eq.s32.totalorder %s31, 0
      %p189 = por %p187, %p188
      %s191 = sadd.s32 %s190, 1
      %p194 = scmp.eq.s32.totalorder %s25, 1
      %p195 = scmp.ne.s32.totalorder %s190, %s192
      %p196 = scmp.eq.s32.totalorder %s25, 0
      %p197 = por %p195, %p196
      %p198 = scmp.ne.s32.totalorder %s190, %s192
      %p199 = scmp.eq.s32.totalorder %s30, 1
      %p200 = por %p198, %p199
      %p201 = scmp.ne.s32.totalorder %s192, %s193
      %p202 = scmp.eq.s32.totalorder %s30, 0
      %p203 = por %p201, %p202
      %p204 = scmp.ne.s32.totalorder %s192, %s193
      %p205 = scmp.eq.s32.totalorder %s31, 1
      %p206 = por %p204, %p205
      %p208 = scmp.ne.s32.totalorder %s193, %s207
      %p209 = scmp.eq.s32.totalorder %s31, 0
      %p210 = por %p208, %p209
      %s212 = sadd.s32 %s211, 1
      %p215 = scmp.eq.s32.totalorder %s25, 1
      %p216 = scmp.ne.s32.totalorder %s211, %s213
      %p217 = scmp.eq.s32.totalorder %s25, 0
      %p218 = por %p216, %p217
      %p219 = scmp.ne.s32.totalorder %s211, %s213
      %p220 = scmp.eq.s32.totalorder %s30, 1
      %p221 = por %p219, %p220
      %p222 = scmp.ne.s32.totalorder %s213, %s214
      %p223 = scmp.eq.s32.totalorder %s30, 0
      %p224 = por %p222, %p223
      %p225 = scmp.ne.s32.totalorder %s213, %s214
      %p226 = scmp.eq.s32.totalorder %s31, 1
      %p227 = por %p225, %p226
      %p229 = scmp.ne.s32.totalorder %s214, %s228
      %p230 = scmp.eq.s32.totalorder %s31, 0
      %p231 = por %p229, %p230
      %s232 = ssub.s32 %s25, %s32
      %p233 = scmp.eq.s32.totalorder %s232, 0
      %s235 = sadd.s32 %s234, 1
      %s236 = scalar_select %p233, %s234, %s235
      %p239 = pneg %p233
      %p240 = scmp.eq.s32.totalorder %s25, 1
      %p241 = por %p239, %p240
      %p242 = scmp.ne.s32.totalorder %s234, %s237
      %p243 = scmp.eq.s32.totalorder %s25, 0
      %p244 = por %p242, %p243
      %p245 = scmp.ne.s32.totalorder %s234, %s237
      %p246 = scmp.eq.s32.totalorder %s30, 1
      %p247 = por %p245, %p246
      %p248 = scmp.ne.s32.totalorder %s237, %s238
      %p249 = scmp.eq.s32.totalorder %s30, 0
      %p250 = por %p248, %p249
      %p251 = scmp.ne.s32.totalorder %s237, %s238
      %p252 = scmp.eq.s32.totalorder %s31, 1
      %p253 = por %p251, %p252
      %p255 = scmp.ne.s32.totalorder %s238, %s254
      %p256 = scmp.eq.s32.totalorder %s31, 0
      %p257 = por %p255, %p256
      %p258 = scmp.le.s32.totalorder 1, %s25
      %p259 = scmp.lt.s32.totalorder %s25, 3
      %p260 = pnand %p258, %p259
      %p261 = pneg %p260
      // Predicated region
      $region9: #{tpu_custom_call.1} parent=5 // pred_check
        _
      $region10: #{tpu_custom_call.1} parent=5 // pred_check_branch
        %263 = sbr.rel (%p260) target = $region12
      $region11: #{tpu_custom_call.1} parent=5 // pred_region
        %s264 = ssub.s32 %s25, 1
        // Predicated region
        $region13: #{tpu_custom_call.1} parent=11 // pred_check
          %p265 = pneg %p98
        $region14: #{tpu_custom_call.1} parent=11 // pred_check_branch
          %267 = sbr.rel (%p265) target = $region16
        $region15: #{tpu_custom_call.1} parent=11 // pred_region
          %269 = vsyncadd [#allocation6], 0
          %s270 = sshll.u32 %s2, 4
          %s271 = int_to_ptr.hbm [resolvable:$true] %s270
          %s272 = sshll.u32 [#allocation7], 4
          %s273 = int_to_ptr.vmem [resolvable:$true] %s272
          %278 = dma.hbm_to_vmem [thread:$0]  %s271, 512, %s273, [#allocation6], 128, 128, 8
        $region16: #{tpu_custom_call.1} parent=11 // pred_fallthru
          _
        // Predicated region
        $region17: #{tpu_custom_call.1} parent=11 // pred_check
          %p279 = pneg %p119
        $region18: #{tpu_custom_call.1} parent=11 // pred_check_branch
          %281 = sbr.rel (%p279) target = $region20
        $region19: #{tpu_custom_call.1} parent=11 // pred_region
          _
        $region20: #{tpu_custom_call.1} parent=11 // pred_fallthru
          _
        // Predicated region
        $region21: #{tpu_custom_call.1} parent=11 // pred_check
          %p282 = pneg %p140
        $region22: #{tpu_custom_call.1} parent=11 // pred_check_branch
          %284 = sbr.rel (%p282) target = $region24
        $region23: #{tpu_custom_call.1} parent=11 // pred_region
          %286 = vsyncadd [#allocation9], 0
          %s287 = sshll.u32 %s4, 4
          %s288 = int_to_ptr.hbm [resolvable:$true] %s287
          %s289 = sshll.u32 [#allocation8], 4
          %s290 = int_to_ptr.vmem [resolvable:$true] %s289
          %295 = dma.hbm_to_vmem [thread:$0]  %s288, 512, %s290, [#allocation9], 128, 128, 8
        $region24: #{tpu_custom_call.1} parent=11 // pred_fallthru
          _
        // Predicated region
        $region25: #{tpu_custom_call.1} parent=11 // pred_check
          %p296 = pneg %p161
        $region26: #{tpu_custom_call.1} parent=11 // pred_check_branch
          %298 = sbr.rel (%p296) target = $region28
        $region27: #{tpu_custom_call.1} parent=11 // pred_region
          _
        $region28: #{tpu_custom_call.1} parent=11 // pred_fallthru
          _
        // Predicated region
        $region29: #{tpu_custom_call.1} parent=11 // pred_check
          %p299 = pneg %p182
        $region30: #{tpu_custom_call.1} parent=11 // pred_check_branch
          %301 = sbr.rel (%p299) target = $region32
        $region31: #{tpu_custom_call.1} parent=11 // pred_region
          %303 = vsyncadd [#allocation9], 0
          %s304 = sshll.u32 %s6, 4
          %s305 = int_to_ptr.hbm [resolvable:$true] %s304
          %s306 = sshll.u32 [#allocation10], 4
          %s307 = int_to_ptr.vmem [resolvable:$true] %s306
          %312 = dma.hbm_to_vmem [thread:$0]  %s305, 512, %s307, [#allocation9], 128, 128, 8
        $region32: #{tpu_custom_call.1} parent=11 // pred_fallthru
          _
        // Predicated region
        $region33: #{tpu_custom_call.1} parent=11 // pred_check
          %p313 = pneg %p203
        $region34: #{tpu_custom_call.1} parent=11 // pred_check_branch
          %315 = sbr.rel (%p313) target = $region36
        $region35: #{tpu_custom_call.1} parent=11 // pred_region
          _
        $region36: #{tpu_custom_call.1} parent=11 // pred_fallthru
          _
        // Predicated region
        $region37: #{tpu_custom_call.1} parent=11 // pred_check
          %p316 = pneg %p224
        $region38: #{tpu_custom_call.1} parent=11 // pred_check_branch
          %318 = sbr.rel (%p316) target = $region40
        $region39: #{tpu_custom_call.1} parent=11 // pred_region
          _
        $region40: #{tpu_custom_call.1} parent=11 // pred_fallthru
          _
      $region12: #{tpu_custom_call.1} parent=5 // pred_fallthru
        _
      %p319 = scmp.lt.s32.totalorder %s25, 2
      // Predicated region
      $region41: #{tpu_custom_call.1} parent=5 // pred_check
        %p320 = pneg %p319
      $region42: #{tpu_custom_call.1} parent=5 // pred_check_branch
        %322 = sbr.rel (%p320) target = $region44
      $region43: #{tpu_custom_call.1} parent=5 // pred_region
        // Predicated region
        $region45: #{tpu_custom_call.1} parent=43 // pred_check
          %p323 = pneg %p45
        $region46: #{tpu_custom_call.1} parent=43 // pred_check_branch
          %325 = sbr.rel (%p323) target = $region48
        $region47: #{tpu_custom_call.1} parent=43 // pred_region
          %s326 = sand.u32 %s35, 1
          %s327 = scalar_lea.sflag [#allocation3], %s326
          %s328 = sand.u32 %s35, 1
          %s329 = smul.addr %s328, 16
          %s330 = scalar_lea.vmem [#allocation2], %s329
          %332 = vsyncadd %s327, 0
          %s333 = smul.addr %s25, 2
          %s334 = smul.addr %s333, 8
          %s335 = scalar_lea.hbm %s0, %s334
          %s336 = sshll.u32 %s335, 4
          %s337 = int_to_ptr.hbm [resolvable:$true] %s336
          %s338 = sshll.u32 %s330, 4
          %s339 = int_to_ptr.vmem [resolvable:$true] %s338
          %344 = dma.hbm_to_vmem [thread:$0]  %s337, 256, %s339, %s327, 128, 128, 8
        $region48: #{tpu_custom_call.1} parent=43 // pred_fallthru
          _
        // Predicated region
        $region49: #{tpu_custom_call.1} parent=43 // pred_check
          %p345 = pneg %p71
        $region50: #{tpu_custom_call.1} parent=43 // pred_check_branch
          %347 = sbr.rel (%p345) target = $region52
        $region51: #{tpu_custom_call.1} parent=43 // pred_region
          %s348 = sand.u32 %s25, 1
          %s349 = scalar_lea.sflag [#allocation6], %s348
          %s350 = sand.u32 %s61, 1
          %s351 = scalar_lea.vmem [#allocation5], %s350
          %353 = vsyncadd %s349, 0
          %s354 = scalar_lea.hbm %s1, %s25
          %s356 = sshll.u32 %s354, 4
          %s357 = int_to_ptr.hbm [resolvable:$true] %s356
          %s358 = sshll.u32 %s351, 4
          %s359 = int_to_ptr.vmem [resolvable:$true] %s358
          %361 = dma.hbm_to_vmem [thread:$0]  %s357, 16, %s359, %s349
        $region52: #{tpu_custom_call.1} parent=43 // pred_fallthru
          _
      $region44: #{tpu_custom_call.1} parent=5 // pred_fallthru
        _
      %p362 = scmp.le.s32.totalorder 1, %s25
      %p363 = scmp.lt.s32.totalorder %s25, 3
      %p364 = pnand %p362, %p363
      %p365 = pneg %p364
      // Predicated region
      $region53: #{tpu_custom_call.1} parent=5 // pred_check
        _
      $region54: #{tpu_custom_call.1} parent=5 // pred_check_branch
        %367 = sbr.rel (%p364) target = $region56
      $region55: #{tpu_custom_call.1} parent=5 // pred_region
        %s368 = ssub.s32 %s25, 1
        %s369 = sand.u32 %s38, 1
        %s370 = scalar_lea.sflag [#allocation3], %s369
        %s371 = sand.u32 %s38, 1
        %s372 = smul.addr %s371, 16
        %s373 = scalar_lea.vmem [#allocation2], %s372
        // Predicated region
        $region57: #{tpu_custom_call.1} parent=55 // pred_check
          %p374 = pneg %p51
        $region58: #{tpu_custom_call.1} parent=55 // pred_check_branch
          %376 = sbr.rel (%p374) target = $region60
        $region59: #{tpu_custom_call.1} parent=55 // pred_region
          %378 = dma.done %s370, 256
        $region60: #{tpu_custom_call.1} parent=55 // pred_fallthru
          _
        %s379 = sand.u32 %s30, 1
        %s380 = scalar_lea.sflag [#allocation6], %s379
        %s381 = sand.u32 %s64, 1
        %s382 = scalar_lea.vmem [#allocation5], %s381
        // Predicated region
        $region61: #{tpu_custom_call.1} parent=55 // pred_check
          %p383 = pneg %p77
        $region62: #{tpu_custom_call.1} parent=55 // pred_check_branch
          %385 = sbr.rel (%p383) target = $region64
        $region63: #{tpu_custom_call.1} parent=55 // pred_region
          %387 = dma.done %s380, 16
        $region64: #{tpu_custom_call.1} parent=55 // pred_fallthru
          _
        // Predicated region
        $region65: #{tpu_custom_call.1} parent=55 // pred_check
          %p388 = pneg %p98
        $region66: #{tpu_custom_call.1} parent=55 // pred_check_branch
          %390 = sbr.rel (%p388) target = $region68
        $region67: #{tpu_custom_call.1} parent=55 // pred_region
          %392 = dma.done [#allocation6], 512
        $region68: #{tpu_custom_call.1} parent=55 // pred_fallthru
          _
        // Predicated region
        $region69: #{tpu_custom_call.1} parent=55 // pred_check
          %p393 = pneg %p140
        $region70: #{tpu_custom_call.1} parent=55 // pred_check_branch
          %395 = sbr.rel (%p393) target = $region72
        $region71: #{tpu_custom_call.1} parent=55 // pred_region
          %397 = dma.done [#allocation9], 512
        $region72: #{tpu_custom_call.1} parent=55 // pred_fallthru
          _
        // Predicated region
        $region73: #{tpu_custom_call.1} parent=55 // pred_check
          %p398 = pneg %p182
        $region74: #{tpu_custom_call.1} parent=55 // pred_check_branch
          %400 = sbr.rel (%p398) target = $region76
        $region75: #{tpu_custom_call.1} parent=55 // pred_region
          %402 = dma.done [#allocation9], 512
        $region76: #{tpu_custom_call.1} parent=55 // pred_fallthru
          _
        %s403 = sand.u32 %s38, 1
        %s404 = scalar_lea.sflag [#allocation3], %s403
        %s405 = sand.u32 %s38, 1
        %s406 = smul.addr %s405, 16
        %s407 = scalar_lea.vmem [#allocation2], %s406
        %p408 = pneg %p51
        %p409 = pneg %p48
        %s410 = sand.u32 %s30, 1
        %s411 = scalar_lea.sflag [#allocation6], %s410
        %s412 = sand.u32 %s64, 1
        %s413 = scalar_lea.vmem [#allocation5], %s412
        %p414 = pneg %p77
        %p415 = pneg %p74
        %p416 = pneg %p98
        %p417 = pneg %p95
        %p418 = pneg %p119
        %p419 = pneg %p116
        %p420 = pneg %p140
        %p421 = pneg %p137
        %p422 = pneg %p161
        %p423 = pneg %p158
        %p424 = pneg %p182
        %p425 = pneg %p179
        %p426 = pneg %p203
        %p427 = pneg %p200
        %p428 = pneg %p224
        %p429 = pneg %p221
        %p430 = pneg %p250
        %p431 = pneg %p247
        %s432 = sand.u32 %s237, 1
        %s433 = scalar_lea.sflag [#allocation4], %s432
        %s434 = sand.u32 %s237, 1
        %s435 = scalar_lea.vmem [#allocation11], %s434
        %v436 = vld [vmem:[%s373] sm:$0xff]
        %v437 = vld [vmem:[%s373 + $0x8] sm:$0xff]
        %v438 = vld [vmem:[%s382] sm:$0x1]
        %v439 = vld [vmem:[%s8] sm:$0xf]
        %v440 = vld [vmem:[#allocation8] sm:$0xff]
        %v441 = vld [vmem:[#allocation8 + $0x8] sm:$0xff]
        %v442 = vld [vmem:[#allocation8 + $0x10] sm:$0xff]
        %v443 = vld [vmem:[#allocation8 + $0x18] sm:$0xff]
        %v444 = vld [vmem:[%s5] sm:$0x1]
        %vm445 = vcmask 122880
        %v446 = vsel %vm445, %v438, 0.0
        %447 = vadd.xlane.f32.xlu0 %v446
        %v448 = vpop.xlane.xlu0 %447
        %v449 = vmax.f32 %v448, 1.0
        %vm450 = vcmask 130048
        %v452 = vsel %vm450, %v438, 0
        %454 = vmatpush.msra.mxu0 0.0
        %455 = vmatpush.msra.mxu0 0.0
        %456 = vmatpush.msra.mxu0 0.0
        %457 = vmatpush.msra.mxu0 0.0
        %458 = vmatpush.msra.mxu0 0.0
        %459 = vmatpush.msra.mxu0 0.0
        %460 = vmatpush.msra.mxu0 0.0
        %461 = vmatpush.msra.mxu0 0.0
        %462 = vmatpush.msra.mxu0 0.0
        %463 = vmatpush.msra.mxu0 0.0
        %464 = vmatpush.msra.mxu0 0.0
        %465 = vmatpush.msra.mxu0 0.0
        %466 = vmatpush.msra.mxu0 0.0
        %467 = vmatpush.msra.mxu0 0.0
        %468 = vmatpush.msra.mxu0 %v437
        %469 = vmatpush.msra.mxu0 %v436
        %470 = vmatmul.f32.gmra.mxu0 %v452
        %v471 = vpop.f32.mrf.mxu0
        %v472 = vadd.f32 0.0, %v471
        %473 = vdwg.mxu0
        %v474 = vrcp.pop %v449
        %v475 = vmul.f32 %v449, %v474
        %v476 = vsub.f32 1.0, %v475
        %v477 = vmul.f32 %v474, %v476
        %v478 = vadd.f32 %v474, %v477
        %vm479 = vweird.f32 %v449
        %vm480 = vweird.f32 %v474
        %vm481 = vmor %vm479, %vm480
        %v482 = vsel %vm481, %v474, %v478
        %v483 = vand.u32 2147483647, %v449
        %vm484 = vcmp.eq.f32.partialorder %v483, 8.507059e+37
        %v485 = vand.u32 %v449, 2147483648
        %v486 = vor.u32 1.1754944e-38, %v485
        %v487 = vsel %vm484, %v486, %v482
        %v488 = vmul.f32 %v472, %v487
        %v489 = vld [vmem:[#allocation7] sm:$0xff]
        %v490 = vld [vmem:[#allocation7 + $0x8] sm:$0xff]
        %v491 = vld [vmem:[#allocation7 + $0x10] sm:$0xff]
        %v492 = vld [vmem:[#allocation7 + $0x18] sm:$0xff]
        %v493 = vld [vmem:[%s3] sm:$0x1]
        %vm494 = vcmask 261120
        %v496 = vsel %vm494, %v488, 0
        %498 = vmatpush.msra.mxu0 0.0
        %499 = vmatpush.msra.mxu0 0.0
        %500 = vmatpush.msra.mxu0 0.0
        %501 = vmatpush.msra.mxu0 0.0
        %502 = vmatpush.msra.mxu0 0.0
        %503 = vmatpush.msra.mxu0 0.0
        %504 = vmatpush.msra.mxu0 0.0
        %505 = vmatpush.msra.mxu0 0.0
        %506 = vmatpush.msra.mxu0 0.0
        %507 = vmatpush.msra.mxu0 0.0
        %508 = vmatpush.msra.mxu0 0.0
        %509 = vmatpush.msra.mxu0 0.0
        %510 = vmatpush.msra.mxu0 %v492
        %511 = vmatpush.msra.mxu0 %v491
        %512 = vmatpush.msra.mxu0 %v490
        %513 = vmatpush.msra.mxu0 %v489
        %514 = vmatmul.f32.gmra.mxu0 %v496
        %v515 = vpop.f32.mrf.mxu0
        %v516 = vadd.f32 %v493, %v515
        %517 = vdwg.mxu0
        %518 = vmatpush.msra.mxu0 0.0
        %519 = vmatpush.msra.mxu0 0.0
        %520 = vmatpush.msra.mxu0 0.0
        %521 = vmatpush.msra.mxu0 0.0
        %522 = vmatpush.msra.mxu0 0.0
        %523 = vmatpush.msra.mxu0 0.0
        %524 = vmatpush.msra.mxu0 0.0
        %525 = vmatpush.msra.mxu0 0.0
        %526 = vmatpush.msra.mxu0 0.0
        %527 = vmatpush.msra.mxu0 0.0
        %528 = vmatpush.msra.mxu0 0.0
        %529 = vmatpush.msra.mxu0 0.0
        %530 = vmatpush.msra.mxu0 %v443
        %531 = vmatpush.msra.mxu0 %v442
        %532 = vmatpush.msra.mxu0 %v441
        %533 = vmatpush.msra.mxu0 %v440
        %534 = vmatmul.f32.gmra.mxu0 %v496
        %v535 = vpop.f32.mrf.mxu0
        %v536 = vadd.f32 %v444, %v535
        %537 = vdwg.mxu0
        %v539 = vperm.slane %v444, 0
        %v542 = vsel %vm494, %v436, 0
        %v545 = vsel %vm494, %v437, 0
        %547 = vmatpush.msra.mxu0 0.0
        %548 = vmatpush.msra.mxu0 0.0
        %549 = vmatpush.msra.mxu0 0.0
        %550 = vmatpush.msra.mxu0 0.0
        %551 = vmatpush.msra.mxu0 0.0
        %552 = vmatpush.msra.mxu0 0.0
        %553 = vmatpush.msra.mxu0 0.0
        %554 = vmatpush.msra.mxu0 0.0
        %555 = vmatpush.msra.mxu0 0.0
        %556 = vmatpush.msra.mxu0 0.0
        %557 = vmatpush.msra.mxu0 0.0
        %558 = vmatpush.msra.mxu0 0.0
        %559 = vmatpush.msra.mxu0 %v443
        %560 = vmatpush.msra.mxu0 %v442
        %561 = vmatpush.msra.mxu0 %v441
        %562 = vmatpush.msra.mxu0 %v440
        %563 = vmatmul.f32.gmra.mxu0 %v542
        %v564 = vpop.f32.mrf.mxu0
        %v565 = vadd.f32 %v539, %v564
        %566 = vmatmul.f32.gmra.mxu0 %v545
        %v567 = vpop.f32.mrf.mxu0
        %v568 = vadd.f32 %v539, %v567
        %569 = vdwg.mxu0
        %v570 = vperm.slane %v516, 0
        %v571 = vmul.f32 %v570, %v439
        %v573 = vsel %vm494, %v571, 0
        %v576 = vsel %vm494, %v565, 0
        %v579 = vsel %vm494, %v568, 0
        %581 = vmatpush.xpose.msra.mxu0 0.0
        %582 = vmatpush.xpose.msra.mxu0 0.0
        %583 = vmatpush.xpose.msra.mxu0 0.0
        %584 = vmatpush.xpose.msra.mxu0 0.0
        %585 = vmatpush.xpose.msra.mxu0 0.0
        %586 = vmatpush.xpose.msra.mxu0 0.0
        %587 = vmatpush.xpose.msra.mxu0 0.0
        %588 = vmatpush.xpose.msra.mxu0 0.0
        %589 = vmatpush.xpose.msra.mxu0 0.0
        %590 = vmatpush.xpose.msra.mxu0 0.0
        %591 = vmatpush.xpose.msra.mxu0 0.0
        %592 = vmatpush.xpose.msra.mxu0 0.0
        %593 = vmatpush.xpose.msra.mxu0 0.0
        %594 = vmatpush.xpose.msra.mxu0 0.0
        %595 = vmatpush.xpose.msra.mxu0 %v579
        %596 = vmatpush.xpose.msra.mxu0 %v576
        %597 = vmatmul.f32.gmra.mxu0 %v573
        %v598 = vpop.f32.mrf.mxu0
        %v599 = vadd.f32 0.0, %v598
        %600 = vdwg.mxu0
        %v601 = vperm.slane %v536, 0
        %v602 = vmul.f32 %v571, %v601
        %vm603 = vcmask 257024
        %v604 = vsel %vm603, %v602, 0.0
        %605 = vadd.xlane.f32.xlu0 %v604
        %v606 = vpop.xlane.xlu0 %605
        %vm607 = vcmp.gt.f32.partialorder %v438, 0.0
        %v608 = vsel %vm607, 1, 0
        %v609 = vperm.slane %v608, 0
        %vm610 = vcmp.eq.s32.totalorder %v609, 1
        %v611 = vsel %vm610, %v599, -1e+30
        %v612 = vsel %vm610, %v606, -1e+30
        %vm613 = vcmask 125952
        %v614 = vsel %vm613, %v611, -inf
        %615 = vmax.xlane.f32.xlu0 %v614
        %v616 = vpop.xlane.xlu0 %615
        %v617 = vmax.f32 %v616, %v612
        %619 = vset.pattern.permute.xlu0 0
        %620 = vperm.xlu0 %619, %v617
        %v621 = vpop.permute.xlu0 %620
        %v623 = vsub.f32 %v611, %v621
        %v624 = vmul.f32 %v623, 1.442695
        %v625 = vpow.pop %v624
        %v626 = vsub.f32 %v612, %v617
        %v627 = vmul.f32 %v626, 1.442695
        %v628 = vpow.pop %v627
        %v629 = vsel %vm613, %v625, 0.0
        %630 = vadd.xlane.f32.xlu0 %v629
        %v631 = vpop.xlane.xlu0 %630
        %v632 = vadd.f32 %v631, %v628
        %v633 = vrcp.pop %v632
        %635 = vset.pattern.permute.xlu0 0
        %636 = vperm.xlu0 %635, %v633
        %v637 = vpop.permute.xlu0 %636
        %v639 = vmul.f32 %v625, %v637
        %v640 = vmul.f32 %v628, %v633
        %642 = vset.pattern.permute.xlu0 0
        %643 = vperm.xlu0 %642, %v640
        %v644 = vpop.permute.xlu0 %643
        %v646 = vmul.f32 %v644, %v601
        %647 = vrot.lane.b32.xlu0 %v565, 96
        %v648 = vpop.permute.xlu0 %647
        %649 = vrot.lane.b32.xlu0 %v568, 96
        %v650 = vpop.permute.xlu0 %649
        %654 = vrot.lane.b32.xlu0 %v646, 96
        %v655 = vpop.permute.xlu0 %654
        %v658 = vsel %vm450, %v639, 0
        %660 = vmatpush.msra.mxu0 0.0
        %661 = vmatpush.msra.mxu0 0.0
        %662 = vmatpush.msra.mxu0 0.0
        %663 = vmatpush.msra.mxu0 0.0
        %664 = vmatpush.msra.mxu0 0.0
        %665 = vmatpush.msra.mxu0 0.0
        %666 = vmatpush.msra.mxu0 0.0
        %667 = vmatpush.msra.mxu0 0.0
        %668 = vmatpush.msra.mxu0 0.0
        %669 = vmatpush.msra.mxu0 0.0
        %670 = vmatpush.msra.mxu0 0.0
        %671 = vmatpush.msra.mxu0 0.0
        %672 = vmatpush.msra.mxu0 0.0
        %673 = vmatpush.msra.mxu0 0.0
        %674 = vmatpush.msra.mxu0 %v650
        %675 = vmatpush.msra.mxu0 %v648
        %676 = vmatmul.f32.gmra.mxu0 %v658
        %v677 = vpop.f32.mrf.mxu0
        %v678 = vadd.f32 %v655, %v677
        %679 = vdwg.mxu0
        %v680 = vmul.f32 %v678, %v439
        %v681 = vsel %vm603, %v680, 0.0
        %v682 = vrot.slane %v681, 4
        %v683 = vadd.f32 %v681, %v682
        %v684 = vrot.slane %v683, 2
        %v685 = vadd.f32 %v683, %v684
        %v686 = vrot.slane %v685, 1
        %v687 = vadd.f32 %v685, %v686
        %v688 = vld [vmem:[#allocation10] sm:$0xff]
        %v689 = vld [vmem:[#allocation10 + $0x8] sm:$0xff]
        %v690 = vld [vmem:[#allocation10 + $0x10] sm:$0xff]
        %v691 = vld [vmem:[#allocation10 + $0x18] sm:$0xff]
        %v692 = vld [vmem:[%s7] sm:$0x1]
        %v694 = vsel %vm494, %v687, 0
        %696 = vmatpush.msra.mxu0 0.0
        %697 = vmatpush.msra.mxu0 0.0
        %698 = vmatpush.msra.mxu0 0.0
        %699 = vmatpush.msra.mxu0 0.0
        %700 = vmatpush.msra.mxu0 0.0
        %701 = vmatpush.msra.mxu0 0.0
        %702 = vmatpush.msra.mxu0 0.0
        %703 = vmatpush.msra.mxu0 0.0
        %704 = vmatpush.msra.mxu0 0.0
        %705 = vmatpush.msra.mxu0 0.0
        %706 = vmatpush.msra.mxu0 0.0
        %707 = vmatpush.msra.mxu0 0.0
        %708 = vmatpush.msra.mxu0 %v691
        %709 = vmatpush.msra.mxu0 %v690
        %710 = vmatpush.msra.mxu0 %v689
        %711 = vmatpush.msra.mxu0 %v688
        %712 = vmatmul.f32.gmra.mxu0 %v694
        %v713 = vpop.f32.mrf.mxu0
        %v714 = vadd.f32 %v692, %v713
        %715 = vdwg.mxu0
        %vm716 = vcmask 253952
        %717 = vst.msk [vmem:[%s435] sm:$0x1] %vm716, %v714
        %s718 = sand.u32 %s237, 1
        %s719 = scalar_lea.sflag [#allocation4], %s718
        %s720 = sand.u32 %s237, 1
        %s721 = scalar_lea.vmem [#allocation11], %s720
        // Predicated region
        $region77: #{tpu_custom_call.1} parent=55 // pred_check
          %p722 = pneg %p247
        $region78: #{tpu_custom_call.1} parent=55 // pred_check_branch
          %724 = sbr.rel (%p722) target = $region80
        $region79: #{tpu_custom_call.1} parent=55 // pred_region
          %726 = vsyncadd %s719, 0
          %s727 = scalar_lea.hbm %s9, %s30
          %s729 = sshll.u32 %s721, 4
          %s730 = int_to_ptr.vmem [resolvable:$true] %s729
          %s731 = sshll.u32 %s727, 4
          %s732 = int_to_ptr.hbm [resolvable:$true] %s731
          %734 = dma.vmem_to_hbm [thread:$0]  %s730, 16, %s732, %s719
        $region80: #{tpu_custom_call.1} parent=55 // pred_fallthru
          _
      $region56: #{tpu_custom_call.1} parent=5 // pred_fallthru
        _
      %p735 = scmp.le.s32.totalorder 2, %s25
      // Predicated region
      $region81: #{tpu_custom_call.1} parent=5 // pred_check
        %p736 = pneg %p735
      $region82: #{tpu_custom_call.1} parent=5 // pred_check_branch
        %738 = sbr.rel (%p736) target = $region84
      $region83: #{tpu_custom_call.1} parent=5 // pred_region
        %s739 = ssub.s32 %s25, 2
        // Predicated region
        $region85: #{tpu_custom_call.1} parent=83 // pred_check
          %p740 = pneg %p253
        $region86: #{tpu_custom_call.1} parent=83 // pred_check_branch
          %742 = sbr.rel (%p740) target = $region88
        $region87: #{tpu_custom_call.1} parent=83 // pred_region
          %s743 = sand.u32 %s238, 1
          %s744 = scalar_lea.sflag [#allocation4], %s743
          %s745 = sand.u32 %s238, 1
          %s746 = scalar_lea.vmem [#allocation11], %s745
          %748 = dma.done %s744, 16
        $region88: #{tpu_custom_call.1} parent=83 // pred_fallthru
          _
      $region84: #{tpu_custom_call.1} parent=5 // pred_fallthru
        _
    $region6: #{tpu_custom_call.1} parent=1 // loop_footer
      %s29 = sadd.s32 1, %s25
    $region7: #{tpu_custom_call.1} parent=1 // loop_footer_branch
      %24 = sbr.rel target = $region3
    $region8: #{tpu_custom_call.1} parent=1 // loop_exit
      _
    %749 = vsyncpa [#allocation3], 1
    %s750 = scalar_lea.sflag [#allocation3], 1
    %751 = vsyncpa %s750, 1
    %752 = vsyncpa [#allocation6], 1
    %s753 = scalar_lea.sflag [#allocation6], 1
    %754 = vsyncpa %s753, 1
    %755 = vsyncpa [#allocation9], 1
    %756 = vsyncpa [#allocation4], 1
    %s757 = scalar_lea.sflag [#allocation4], 1
    %758 = vsyncpa %s757, 1

</llo_original>
